<compile_context>
chip_gen: v7x
topology: tpu7x:2x2x1
jax: 0.10.0
libtpu: 0.0.40
codegen_flags: <defaults>
</compile_context>

<pallas_src>
import functools

import jax
import jax.numpy as jnp
from jax.experimental import pallas as pl
from jax.experimental.pallas import tpu as pltpu


# ------------------------- fused single-step kernel -------------------------

def _attention_fused_kernel(emb_ref, wfc_ref, bfc_ref, att_ref, z_ref):
    """Single grid step: batched score matmul + exact softmax + weighted sum.

    emb_ref : (P*N, D) f32   all metapath embeddings stacked along rows
    wfc_ref : (D, D)   bf16  fc weight, pre-transposed (x @ W^T)
    bfc_ref : (1, D)   f32   fc bias
    att_ref : (1, D)   f32   attention vector
    z_ref   : (N, D)   f32   output z_mp
    """
    pn, _ = emb_ref.shape
    n = z_ref.shape[0]
    p_paths = pn // n
    inv_n = 1.0 / n

    emb = emb_ref[...]                                            # (P*N, D) f32

    # ---- scores: ONE batched MXU matmul over all metapaths -----------------
    hfc = jnp.dot(emb.astype(jnp.bfloat16), wfc_ref[...],
                  preferred_element_type=jnp.float32) + bfc_ref[...]   # (P*N, D)
    ta = jnp.tanh(hfc) * att_ref[...]                                  # (P*N, D)

    scores = []
    for p in range(p_paths):
        blk = ta[p * n:(p + 1) * n, :]                       # (N, D) static slice
        col = jnp.sum(blk, axis=1, keepdims=True)            # (N, 1) lane reduce
        scores.append(jnp.sum(col, axis=0, keepdims=True) * inv_n)    # (1, 1)

    # ---- exact softmax over the P scores (tiny (1,1) f32 vectors) ----------
    m = scores[0]
    for p in range(1, p_paths):
        m = jnp.maximum(m, scores[p])
    exps = [jnp.exp(s - m) for s in scores]
    l = exps[0]
    for p in range(1, p_paths):
        l = l + exps[p]
    inv_l = pl.reciprocal(l, approx=True)                    # EUP slot, ~free

    # ---- z_mp = sum_i beta_i * E_i  (f32 embeddings, f32 accumulate) -------
    z = (exps[0] * inv_l) * emb[0:n, :]
    for p in range(1, p_paths):
        z = z + (exps[p] * inv_l) * emb[p * n:(p + 1) * n, :]
    z_ref[...] = z


# --------------------- streamed online-softmax fallback ---------------------

def _attention_streamed_kernel(emb_ref, wfc_ref, bfc_ref, att_ref,  # inputs
                               z_ref,                               # output
                               m_sc, l_sc):                         # scratches
    """Grid step i == metapath i: score + online-softmax weighted accumulation."""
    i = pl.program_id(0)
    n_paths = pl.num_programs(0)

    emb = emb_ref[...]                                        # (N, D) f32 (squeezed)
    n = emb.shape[0]

    # score_i = att . mean_rows( tanh(emb @ Wfc^T + bfc) )
    hfc = jnp.dot(emb.astype(jnp.bfloat16), wfc_ref[...],
                  preferred_element_type=jnp.float32) + bfc_ref[...]   # (N, D)
    ta = jnp.tanh(hfc) * att_ref[...]                                  # (N, D)
    col = jnp.sum(ta, axis=1, keepdims=True)                           # (N, 1)
    score = jnp.sum(col, axis=0, keepdims=True) * (1.0 / n)            # (1, 1)

    @pl.when(i == 0)
    def _():
        # exp(score - score) == 1  ->  direct write, no zero-init pass.
        m_sc[...] = score
        l_sc[...] = jnp.ones_like(l_sc)
        z_ref[...] = emb

    @pl.when(i > 0)
    def _():
        m_prev = m_sc[...]
        m_new = jnp.maximum(m_prev, score)
        scale = jnp.exp(m_prev - m_new)                # rescale old accumulation
        w = jnp.exp(score - m_new)                     # weight of current metapath
        l_new = scale * l_sc[...] + w
        z_new = scale * z_ref[...] + w * emb
        # fold the final 1/l normalization into the last accumulation step
        is_last = i == n_paths - 1
        norm = jnp.where(is_last,
                         pl.reciprocal(l_new, approx=True),
                         jnp.ones_like(l_new))
        z_ref[...] = z_new * norm
        l_sc[...] = l_new
        m_sc[...] = m_new


# ------------------------------- wrapper -------------------------------

_FUSED_VMEM_BUDGET = 24 * 1024 * 1024   # leave headroom for f32 intermediates


def attention_forward(embeds, params, *, force_streamed=False):
    """embeds: (P, N, D) stacked metapath embeddings -> z_mp (N, D)."""
    P, N, D = embeds.shape
    wfc_bf16 = params["wfc_t"].astype(jnp.bfloat16)          # (D, D), x @ W^T
    bfc = params["bfc"].reshape(1, D).astype(jnp.float32)    # (1, D)
    att = params["att"].reshape(1, D).astype(jnp.float32)    # (1, D)

    # emb block + hfc/ta f32 intermediates ~= 3x the stack size
    fused_fits = 3 * P * N * D * 4 <= _FUSED_VMEM_BUDGET

    if fused_fits and not force_streamed:
        emb2 = embeds.reshape(P * N, D)   # free layout change outside the kernel
        return pl.pallas_call(
            _attention_fused_kernel,
            out_shape=jax.ShapeDtypeStruct((N, D), jnp.float32),
            compiler_params=pltpu.CompilerParams(
                vmem_limit_bytes=64 * 1024 * 1024),
        )(emb2, wfc_bf16, bfc, att)

    # ---- streamed online-softmax fallback (one metapath per grid step) ----
    return pl.pallas_call(
        _attention_streamed_kernel,
        out_shape=jax.ShapeDtypeStruct((N, D), jnp.float32),
        grid_spec=pltpu.PrefetchScalarGridSpec(
            num_scalar_prefetch=0,
            grid=(P,),
            in_specs=[
                pl.BlockSpec((pl.Squeezed(), N, D), lambda i: (i, 0, 0)),  # E_i
                pl.BlockSpec((D, D), lambda i: (0, 0)),                    # Wfc^T
                pl.BlockSpec((1, D), lambda i: (0, 0)),                    # bfc
                pl.BlockSpec((1, D), lambda i: (0, 0)),                    # att
            ],
            # constant index map -> output block resident in VMEM across the
            # grid; doubles as the online-softmax accumulator.
            out_specs=pl.BlockSpec((N, D), lambda i: (0, 0)),
            scratch_shapes=[
                pltpu.VMEM((1, 1), jnp.float32),   # running max  m
                pltpu.VMEM((1, 1), jnp.float32),   # running sum  l
            ],
        ),
        compiler_params=pltpu.CompilerParams(
            dimension_semantics=("arbitrary",),    # P axis carries the accumulator
            vmem_limit_bytes=64 * 1024 * 1024),
    )(embeds, wfc_bf16, bfc, att)


# ------------------------- reference (pure JAX) -------------------------

def attention_reference(embeds, params):
    P, N, D = embeds.shape
    scores = []
    for i in range(P):
        hfc = jnp.dot(embeds[i], params["wfc_t"],
                      precision="highest") + params["bfc"].reshape(1, D)
        sp = jnp.mean(jnp.tanh(hfc), axis=0)
        scores.append(jnp.sum(params["att"].reshape(D) * sp))
    beta = jax.nn.softmax(jnp.stack(scores))
    z = sum(beta[i] * embeds[i] for i in range(P))
    return z, beta


# ------------------------- parameter init -------------------------

def xavier_normal(key, shape, gain=1.414):
    fan_out, fan_in = shape[-2], shape[-1]
    std = gain * (2.0 / (fan_in + fan_out)) ** 0.5
    return std * jax.random.normal(key, shape, dtype=jnp.float32)


if __name__ == "__main__":
    P, N, D = 3, 128, 128          # P metapath embeddings, N nodes, hidden_dim D
    key = jax.random.PRNGKey(0)
    ks = jax.random.split(key, 5)

    # inputs: stacked metapath embeddings (the `embeds` list in PyTorch)
    embeds = jax.random.normal(ks[0], (P, N, D), dtype=jnp.float32)

    # deterministic parameters (shapes from Attention.__init__)
    wfc = xavier_normal(ks[1], (D, D))                     # nn.Linear weight (out, in)
    params = {
        "wfc_t": wfc.T,                                    # pre-transposed for x @ W^T
        "bfc": 0.01 * jax.random.normal(ks[2], (D,), dtype=jnp.float32),
        "att": xavier_normal(ks[3], (1, D)),
    }

    z_ref_out, beta_ref = attention_reference(embeds, params)

    # primary fused single-step path (what the demo shapes exercise)
    fwd = jax.jit(attention_forward)
    z_fused = fwd(embeds, params)
    jax.block_until_ready(z_fused)
    assert jnp.all(jnp.isfinite(z_fused))
    assert jnp.allclose(z_fused, z_ref_out, rtol=1e-2, atol=1e-2)

    # streamed online-softmax fallback (large-N path), exercised for coverage
    fwd_streamed = jax.jit(functools.partial(attention_forward, force_streamed=True))
    z_streamed = fwd_streamed(embeds, params)
    jax.block_until_ready(z_streamed)
    assert jnp.all(jnp.isfinite(z_streamed))
    assert jnp.allclose(z_streamed, z_ref_out, rtol=1e-2, atol=1e-2)

    print("KERNEL_OK")
</pallas_src>

<mosaic_0001>
module attributes {stable_mosaic.version = 11 : i64} {
  func.func @_attention_fused_kernel(%arg0: memref<384x128xf32, #tpu.memory_space<vmem>>, %arg1: memref<128x128xbf16, #tpu.memory_space<vmem>>, %arg2: memref<1x128xf32, #tpu.memory_space<vmem>>, %arg3: memref<1x128xf32, #tpu.memory_space<vmem>>, %arg4: memref<128x128xf32, #tpu.memory_space<vmem>>) attributes {dimension_semantics = [], scalar_prefetch = 0 : i64, scratch_operands = 0 : i64, tpu.core_type = #tpu.core_type<tc>} {
    %c0 = arith.constant 0 : index
    %c0_0 = arith.constant 0 : index
    %0 = vector.load %arg0[%c0, %c0_0] : memref<384x128xf32, #tpu.memory_space<vmem>>, vector<384x128xf32>
    %1 = arith.truncf %0 : vector<384x128xf32> to vector<384x128xbf16>
    %c0_1 = arith.constant 0 : index
    %c0_2 = arith.constant 0 : index
    %2 = vector.load %arg1[%c0_1, %c0_2] : memref<128x128xbf16, #tpu.memory_space<vmem>>, vector<128x128xbf16>
    %cst = arith.constant dense<0.000000e+00> : vector<384x128xf32>
    %3 = tpu.matmul %1, %2, %cst {dimension_numbers = #tpu.dot_dimension_numbers<[1], [0], [0], [1], [0, 0, 1, 1], [], []>} : vector<384x128xbf16>, vector<128x128xbf16>, vector<384x128xf32> -> vector<384x128xf32>
    %c0_3 = arith.constant 0 : index
    %c0_4 = arith.constant 0 : index
    %4 = vector.load %arg2[%c0_3, %c0_4] : memref<1x128xf32, #tpu.memory_space<vmem>>, vector<1x128xf32>
    %5 = vector.broadcast %4 : vector<1x128xf32> to vector<384x128xf32>
    %6 = arith.addf %3, %5 : vector<384x128xf32>
    %7 = math.tanh %6 : vector<384x128xf32>
    %c0_5 = arith.constant 0 : index
    %c0_6 = arith.constant 0 : index
    %8 = vector.load %arg3[%c0_5, %c0_6] : memref<1x128xf32, #tpu.memory_space<vmem>>, vector<1x128xf32>
    %9 = vector.broadcast %8 : vector<1x128xf32> to vector<384x128xf32>
    %10 = arith.mulf %7, %9 : vector<384x128xf32>
    %11 = vector.extract_strided_slice %10 {offsets = [0, 0], sizes = [128, 128], strides = [1, 1]} : vector<384x128xf32> to vector<128x128xf32>
    %cst_7 = arith.constant dense<0.000000e+00> : vector<128xf32>
    %12 = vector.multi_reduction <add>, %11, %cst_7 [1] : vector<128x128xf32> to vector<128xf32>
    %13 = vector.shape_cast %12 : vector<128xf32> to vector<128x1xf32>
    %cst_8 = arith.constant dense<0.000000e+00> : vector<1xf32>
    %14 = vector.multi_reduction <add>, %13, %cst_8 [0] : vector<128x1xf32> to vector<1xf32>
    %15 = vector.shape_cast %14 : vector<1xf32> to vector<1x1xf32>
    %cst_9 = arith.constant 7.812500e-03 : f32
    %16 = vector.broadcast %cst_9 : f32 to vector<1x1xf32>
    %17 = arith.mulf %15, %16 : vector<1x1xf32>
    %18 = vector.extract_strided_slice %10 {offsets = [128, 0], sizes = [128, 128], strides = [1, 1]} : vector<384x128xf32> to vector<128x128xf32>
    %cst_10 = arith.constant dense<0.000000e+00> : vector<128xf32>
    %19 = vector.multi_reduction <add>, %18, %cst_10 [1] : vector<128x128xf32> to vector<128xf32>
    %20 = vector.shape_cast %19 : vector<128xf32> to vector<128x1xf32>
    %cst_11 = arith.constant dense<0.000000e+00> : vector<1xf32>
    %21 = vector.multi_reduction <add>, %20, %cst_11 [0] : vector<128x1xf32> to vector<1xf32>
    %22 = vector.shape_cast %21 : vector<1xf32> to vector<1x1xf32>
    %cst_12 = arith.constant 7.812500e-03 : f32
    %23 = vector.broadcast %cst_12 : f32 to vector<1x1xf32>
    %24 = arith.mulf %22, %23 : vector<1x1xf32>
    %25 = vector.extract_strided_slice %10 {offsets = [256, 0], sizes = [128, 128], strides = [1, 1]} : vector<384x128xf32> to vector<128x128xf32>
    %cst_13 = arith.constant dense<0.000000e+00> : vector<128xf32>
    %26 = vector.multi_reduction <add>, %25, %cst_13 [1] : vector<128x128xf32> to vector<128xf32>
    %27 = vector.shape_cast %26 : vector<128xf32> to vector<128x1xf32>
    %cst_14 = arith.constant dense<0.000000e+00> : vector<1xf32>
    %28 = vector.multi_reduction <add>, %27, %cst_14 [0] : vector<128x1xf32> to vector<1xf32>
    %29 = vector.shape_cast %28 : vector<1xf32> to vector<1x1xf32>
    %cst_15 = arith.constant 7.812500e-03 : f32
    %30 = vector.broadcast %cst_15 : f32 to vector<1x1xf32>
    %31 = arith.mulf %29, %30 : vector<1x1xf32>
    %32 = arith.maximumf %17, %24 : vector<1x1xf32>
    %33 = arith.maximumf %32, %31 : vector<1x1xf32>
    %34 = arith.subf %17, %33 : vector<1x1xf32>
    %35 = math.exp %34 : vector<1x1xf32>
    %36 = arith.subf %24, %33 : vector<1x1xf32>
    %37 = math.exp %36 : vector<1x1xf32>
    %38 = arith.subf %31, %33 : vector<1x1xf32>
    %39 = math.exp %38 : vector<1x1xf32>
    %40 = arith.addf %35, %37 : vector<1x1xf32>
    %41 = arith.addf %40, %39 : vector<1x1xf32>
    %42 = tpu.reciprocal %41 {approx = true} : vector<1x1xf32> -> vector<1x1xf32>
    %43 = arith.mulf %35, %42 : vector<1x1xf32>
    %44 = vector.extract_strided_slice %0 {offsets = [0, 0], sizes = [128, 128], strides = [1, 1]} : vector<384x128xf32> to vector<128x128xf32>
    %45 = vector.broadcast %43 : vector<1x1xf32> to vector<128x128xf32>
    %46 = arith.mulf %45, %44 : vector<128x128xf32>
    %47 = arith.mulf %37, %42 : vector<1x1xf32>
    %48 = vector.extract_strided_slice %0 {offsets = [128, 0], sizes = [128, 128], strides = [1, 1]} : vector<384x128xf32> to vector<128x128xf32>
    %49 = vector.broadcast %47 : vector<1x1xf32> to vector<128x128xf32>
    %50 = arith.mulf %49, %48 : vector<128x128xf32>
    %51 = arith.addf %46, %50 : vector<128x128xf32>
    %52 = arith.mulf %39, %42 : vector<1x1xf32>
    %53 = vector.extract_strided_slice %0 {offsets = [256, 0], sizes = [128, 128], strides = [1, 1]} : vector<384x128xf32> to vector<128x128xf32>
    %54 = vector.broadcast %52 : vector<1x1xf32> to vector<128x128xf32>
    %55 = arith.mulf %54, %53 : vector<128x128xf32>
    %56 = arith.addf %51, %55 : vector<128x128xf32>
    %c0_16 = arith.constant 0 : index
    %c0_17 = arith.constant 0 : index
    %57 = vector.load %arg4[%c0_16, %c0_17] : memref<128x128xf32, #tpu.memory_space<vmem>>, vector<128x128xf32>
    tpu.vector_store %arg4[%c0_16, %c0_17], %56 {strides = array<i32>} : memref<128x128xf32, #tpu.memory_space<vmem>>, vector<128x128xf32>,
    return
  }
}

</mosaic_0001>

<llo_original>
// kernel: attention_forward.1
$region0: #{attention_forward.1}
  #allocation0 [shape = 'u32[]', space=smem, size = 0x4, offset = 0x4, fixed_abs, tag = 'smem constant byte address 0x4 - core index']
  #allocation1 [shape = 'u32[144,128]{1,0:T(1,128)}', space=vmem, size = 0x12000, scoped, tag = 'internal scratch']
  %s0 = inlined_call_operand.hbm [shape: f32[384,128], index: 0, kind: input, shape index: {}]
  %s1 = inlined_call_operand.hbm [shape: bf16[128,128], index: 1, kind: input, shape index: {}]
  %s2 = inlined_call_operand.hbm [shape: f32[1,128], index: 2, kind: input, shape index: {}]
  %s3 = inlined_call_operand.hbm [shape: f32[1,128], index: 3, kind: input, shape index: {}]
  %s4 = inlined_call_operand.hbm [shape: f32[128,128], index: 4, kind: output, shape index: {}]
  %s5 = sld [smem:[#allocation0]]
  $region42: #{attention_forward.1} parent=0
    _
  %s7 = ssub.s32 1, %s5
  %s8 = scalar_select 0, %s7, %s5
  $region1: #{attention_forward.1} parent=0
    #allocation2 [shape = 'u8[196608]{0}', space=vmem, size = 0x30000, scoped, tag = 'input window, operand 0, single buffered']
    #allocation3 [shape = 's32[1]{0}', space=sflag, size = 0x4, scoped, tag = 'scoped memory for attention_forward.1']
    #allocation4 [shape = 's32[1]{0}', space=sflag, size = 0x4, scoped, tag = 'scoped memory for attention_forward.1']
    #allocation5 [shape = 'u8[32768]{0}', space=vmem, size = 0x8000, scoped, tag = 'input window, operand 1, single buffered']
    #allocation6 [shape = 's32[1]{0}', space=sflag, size = 0x4, scoped, tag = 'scoped memory for attention_forward.1']
    #allocation7 [shape = 'u8[512]{0}', space=vmem, size = 0x400, scoped, tag = 'input window, operand 2, single buffered']
    #allocation8 [shape = 'u8[512]{0}', space=vmem, size = 0x400, scoped, tag = 'input window, operand 3, single buffered']
    #allocation9 [shape = 's32[1]{0}', space=sflag, size = 0x4, scoped, tag = 'scoped memory for attention_forward.1']
    #allocation10 [shape = 'u8[65536]{0}', space=vmem, size = 0x10000, scoped, tag = 'output window, operand 0, single buffered']
    %9 = vsyncpa [#allocation3], 0
    %10 = vsyncpa [#allocation6], 0
    %11 = vsyncpa [#allocation9], 0
    %12 = vsyncpa [#allocation4], 0
    // Predicated region
    $region2: #{attention_forward.1} parent=1 // pred_check
      _
    $region3: #{attention_forward.1} parent=1 // pred_check_branch
      %14 = sbr.rel (0) target = $region5
    $region4: #{attention_forward.1} parent=1 // pred_region
      %s16 = ssub.s32 6144, 6144
      %17 = vsyncadd [#allocation3], %s16
      %s18 = sshll.u32 [#allocation2], 4
      %s19 = int_to_ptr.vmem [resolvable:$true] %s18
      %24 = dma.hbm_to_vmem [thread:$0]  %s0, 6144, %s19, [#allocation3], 128, 128, 8
    $region5: #{attention_forward.1} parent=1 // pred_fallthru
      _
    // Predicated region
    $region6: #{attention_forward.1} parent=1 // pred_check
      _
    $region7: #{attention_forward.1} parent=1 // pred_check_branch
      %26 = sbr.rel (0) target = $region9
    $region8: #{attention_forward.1} parent=1 // pred_region
      %s28 = ssub.s32 1024, 1024
      %29 = vsyncadd [#allocation6], %s28
      %s30 = sshll.u32 [#allocation5], 4
      %s31 = int_to_ptr.vmem [resolvable:$true] %s30
      %36 = dma.hbm_to_vmem [thread:$0]  %s1, 1024, %s31, [#allocation6], 64, 64, 4
    $region9: #{attention_forward.1} parent=1 // pred_fallthru
      _
    // Predicated region
    $region10: #{attention_forward.1} parent=1 // pred_check
      _
    $region11: #{attention_forward.1} parent=1 // pred_check_branch
      %38 = sbr.rel (0) target = $region13
    $region12: #{attention_forward.1} parent=1 // pred_region
      %s40 = ssub.s32 16, 16
      %41 = vsyncadd [#allocation6], %s40
      %s43 = sshll.u32 [#allocation7], 4
      %s44 = int_to_ptr.vmem [resolvable:$true] %s43
      %46 = dma.hbm_to_vmem [thread:$0]  %s2, 16, %s44, [#allocation6]
    $region13: #{attention_forward.1} parent=1 // pred_fallthru
      _
    // Predicated region
    $region14: #{attention_forward.1} parent=1 // pred_check
      _
    $region15: #{attention_forward.1} parent=1 // pred_check_branch
      %48 = sbr.rel (0) target = $region17
    $region16: #{attention_forward.1} parent=1 // pred_region
      %s50 = ssub.s32 16, 16
      %51 = vsyncadd [#allocation9], %s50
      %s53 = sshll.u32 [#allocation8], 4
      %s54 = int_to_ptr.vmem [resolvable:$true] %s53
      %56 = dma.hbm_to_vmem [thread:$0]  %s3, 16, %s54, [#allocation9]
    $region17: #{attention_forward.1} parent=1 // pred_fallthru
      _
    // Predicated region
    $region18: #{attention_forward.1} parent=1 // pred_check
      _
    $region19: #{attention_forward.1} parent=1 // pred_check_branch
      %58 = sbr.rel (0) target = $region21
    $region20: #{attention_forward.1} parent=1 // pred_region
      %59 = dma.done [#allocation3], 6144
    $region21: #{attention_forward.1} parent=1 // pred_fallthru
      _
    // Predicated region
    $region22: #{attention_forward.1} parent=1 // pred_check
      _
    $region23: #{attention_forward.1} parent=1 // pred_check_branch
      %61 = sbr.rel (0) target = $region25
    $region24: #{attention_forward.1} parent=1 // pred_region
      %62 = dma.done [#allocation6], 1024
    $region25: #{attention_forward.1} parent=1 // pred_fallthru
      _
    // Predicated region
    $region26: #{attention_forward.1} parent=1 // pred_check
      _
    $region27: #{attention_forward.1} parent=1 // pred_check_branch
      %64 = sbr.rel (0) target = $region29
    $region28: #{attention_forward.1} parent=1 // pred_region
      %65 = dma.done [#allocation6], 16
    $region29: #{attention_forward.1} parent=1 // pred_fallthru
      _
    // Predicated region
    $region30: #{attention_forward.1} parent=1 // pred_check
      _
    $region31: #{attention_forward.1} parent=1 // pred_check_branch
      %67 = sbr.rel (0) target = $region33
    $region32: #{attention_forward.1} parent=1 // pred_region
      %68 = dma.done [#allocation9], 16
    $region33: #{attention_forward.1} parent=1 // pred_fallthru
      _
    %v70 = vld [vmem:[#allocation2] sm:$0xff]
    %v71 = vld [vmem:[#allocation2 + $0x8] sm:$0xff]
    %v72 = vld [vmem:[#allocation2 + $0x10] sm:$0xff]
    %v73 = vld [vmem:[#allocation2 + $0x18] sm:$0xff]
    %v74 = vld [vmem:[#allocation2 + $0x20] sm:$0xff]
    %v75 = vld [vmem:[#allocation2 + $0x28] sm:$0xff]
    %v76 = vld [vmem:[#allocation2 + $0x30] sm:$0xff]
    %v77 = vld [vmem:[#allocation2 + $0x38] sm:$0xff]
    %v78 = vld [vmem:[#allocation2 + $0x40] sm:$0xff]
    %v79 = vld [vmem:[#allocation2 + $0x48] sm:$0xff]
    %v80 = vld [vmem:[#allocation2 + $0x50] sm:$0xff]
    %v81 = vld [vmem:[#allocation2 + $0x58] sm:$0xff]
    %v82 = vld [vmem:[#allocation2 + $0x60] sm:$0xff]
    %v83 = vld [vmem:[#allocation2 + $0x68] sm:$0xff]
    %v84 = vld [vmem:[#allocation2 + $0x70] sm:$0xff]
    %v85 = vld [vmem:[#allocation2 + $0x78] sm:$0xff]
    %v86 = vld [vmem:[#allocation2 + $0x80] sm:$0xff]
    %v87 = vld [vmem:[#allocation2 + $0x88] sm:$0xff]
    %v88 = vld [vmem:[#allocation2 + $0x90] sm:$0xff]
    %v89 = vld [vmem:[#allocation2 + $0x98] sm:$0xff]
    %v90 = vld [vmem:[#allocation2 + $0xa0] sm:$0xff]
    %v91 = vld [vmem:[#allocation2 + $0xa8] sm:$0xff]
    %v92 = vld [vmem:[#allocation2 + $0xb0] sm:$0xff]
    %v93 = vld [vmem:[#allocation2 + $0xb8] sm:$0xff]
    %v94 = vld [vmem:[#allocation2 + $0xc0] sm:$0xff]
    %v95 = vld [vmem:[#allocation2 + $0xc8] sm:$0xff]
    %v96 = vld [vmem:[#allocation2 + $0xd0] sm:$0xff]
    %v97 = vld [vmem:[#allocation2 + $0xd8] sm:$0xff]
    %v98 = vld [vmem:[#allocation2 + $0xe0] sm:$0xff]
    %v99 = vld [vmem:[#allocation2 + $0xe8] sm:$0xff]
    %v100 = vld [vmem:[#allocation2 + $0xf0] sm:$0xff]
    %v101 = vld [vmem:[#allocation2 + $0xf8] sm:$0xff]
    %v102 = vld [vmem:[#allocation2 + $0x100] sm:$0xff]
    %v103 = vld [vmem:[#allocation2 + $0x108] sm:$0xff]
    %v104 = vld [vmem:[#allocation2 + $0x110] sm:$0xff]
    %v105 = vld [vmem:[#allocation2 + $0x118] sm:$0xff]
    %v106 = vld [vmem:[#allocation2 + $0x120] sm:$0xff]
    %v107 = vld [vmem:[#allocation2 + $0x128] sm:$0xff]
    %v108 = vld [vmem:[#allocation2 + $0x130] sm:$0xff]
    %v109 = vld [vmem:[#allocation2 + $0x138] sm:$0xff]
    %v110 = vld [vmem:[#allocation2 + $0x140] sm:$0xff]
    %v111 = vld [vmem:[#allocation2 + $0x148] sm:$0xff]
    %v112 = vld [vmem:[#allocation2 + $0x150] sm:$0xff]
    %v113 = vld [vmem:[#allocation2 + $0x158] sm:$0xff]
    %v114 = vld [vmem:[#allocation2 + $0x160] sm:$0xff]
    %v115 = vld [vmem:[#allocation2 + $0x168] sm:$0xff]
    %v116 = vld [vmem:[#allocation2 + $0x170] sm:$0xff]
    %v117 = vld [vmem:[#allocation2 + $0x178] sm:$0xff]
    %v118 = vpack.c.bf16 %v71, %v70
    %v119 = vpack.c.bf16 %v73, %v72
    %v120 = vpack.c.bf16 %v75, %v74
    %v121 = vpack.c.bf16 %v77, %v76
    %v122 = vpack.c.bf16 %v79, %v78
    %v123 = vpack.c.bf16 %v81, %v80
    %v124 = vpack.c.bf16 %v83, %v82
    %v125 = vpack.c.bf16 %v85, %v84
    %v126 = vpack.c.bf16 %v87, %v86
    %v127 = vpack.c.bf16 %v89, %v88
    %v128 = vpack.c.bf16 %v91, %v90
    %v129 = vpack.c.bf16 %v93, %v92
    %v130 = vpack.c.bf16 %v95, %v94
    %v131 = vpack.c.bf16 %v97, %v96
    %v132 = vpack.c.bf16 %v99, %v98
    %v133 = vpack.c.bf16 %v101, %v100
    %v134 = vpack.c.bf16 %v103, %v102
    %v135 = vpack.c.bf16 %v105, %v104
    %v136 = vpack.c.bf16 %v107, %v106
    %v137 = vpack.c.bf16 %v109, %v108
    %v138 = vpack.c.bf16 %v111, %v110
    %v139 = vpack.c.bf16 %v113, %v112
    %v140 = vpack.c.bf16 %v115, %v114
    %v141 = vpack.c.bf16 %v117, %v116
    %v142 = vld [vmem:[#allocation5] sm:$0xf]
    %v143 = vld [vmem:[#allocation5 + $0x4] sm:$0xf]
    %v144 = vld [vmem:[#allocation5 + $0x8] sm:$0xf]
    %v145 = vld [vmem:[#allocation5 + $0xc] sm:$0xf]
    %v146 = vld [vmem:[#allocation5 + $0x10] sm:$0xf]
    %v147 = vld [vmem:[#allocation5 + $0x14] sm:$0xf]
    %v148 = vld [vmem:[#allocation5 + $0x18] sm:$0xf]
    %v149 = vld [vmem:[#allocation5 + $0x1c] sm:$0xf]
    %v150 = vld [vmem:[#allocation5 + $0x20] sm:$0xf]
    %v151 = vld [vmem:[#allocation5 + $0x24] sm:$0xf]
    %v152 = vld [vmem:[#allocation5 + $0x28] sm:$0xf]
    %v153 = vld [vmem:[#allocation5 + $0x2c] sm:$0xf]
    %v154 = vld [vmem:[#allocation5 + $0x30] sm:$0xf]
    %v155 = vld [vmem:[#allocation5 + $0x34] sm:$0xf]
    %v156 = vld [vmem:[#allocation5 + $0x38] sm:$0xf]
    %v157 = vld [vmem:[#allocation5 + $0x3c] sm:$0xf]
    %v158 = vld [vmem:[#allocation7] sm:$0x1]
    %v160 = vlaneseq
    %v161 = vshrl.u32 %v160, 7
    %v162 = vsub.s32 0, %v161
    %v163 = vrot.slane %v158, %v162
    %v181 = vunpack.c.l.b16 %v142
    %v182 = vunpack.c.l.b16 %v143
    %v183 = vunpack.c.l.b16 %v144
    %v184 = vunpack.c.l.b16 %v145
    %v185 = vunpack.c.l.b16 %v146
    %v186 = vunpack.c.l.b16 %v147
    %v187 = vunpack.c.l.b16 %v148
    %v188 = vunpack.c.l.b16 %v149
    %v189 = vunpack.c.l.b16 %v150
    %v190 = vunpack.c.l.b16 %v151
    %v191 = vunpack.c.l.b16 %v152
    %v192 = vunpack.c.l.b16 %v153
    %v193 = vunpack.c.l.b16 %v154
    %v194 = vunpack.c.l.b16 %v155
    %v195 = vunpack.c.l.b16 %v156
    %v196 = vunpack.c.l.b16 %v157
    %v197 = vpack.c.b16 %v182, %v181
    %v198 = vpack.c.b16 %v184, %v183
    %v199 = vpack.c.b16 %v186, %v185
    %v200 = vpack.c.b16 %v188, %v187
    %v201 = vpack.c.b16 %v190, %v189
    %v202 = vpack.c.b16 %v192, %v191
    %v203 = vpack.c.b16 %v194, %v193
    %v204 = vpack.c.b16 %v196, %v195
    %213 = vmatprep.subr.bf16.mxu0 0
    %214 = vmatpush1.bf16.msra.mxu0 %v197
    %215 = vmatprep.subr.bf16.mxu0 0
    %216 = vmatpush1.bf16.msra.mxu0 %v198
    %217 = vmatprep.subr.bf16.mxu0 0
    %218 = vmatpush1.bf16.msra.mxu0 %v199
    %219 = vmatprep.subr.bf16.mxu0 0
    %220 = vmatpush1.bf16.msra.mxu0 %v200
    %221 = vmatprep.subr.bf16.mxu0 0
    %222 = vmatpush1.bf16.msra.mxu0 %v201
    %223 = vmatprep.subr.bf16.mxu0 0
    %224 = vmatpush1.bf16.msra.mxu0 %v202
    %225 = vmatprep.subr.bf16.mxu0 0
    %226 = vmatpush1.bf16.msra.mxu0 %v203
    %227 = vmatprep.subr.bf16.mxu0 0
    %228 = vmatpush1.bf16.msra.mxu0 %v204
    %229 = vmatprep.subr.bf16.mxu0 0
    %230 = vmatpush1.bf16.msra.mxu0 0
    %231 = vmatprep.subr.bf16.mxu0 0
    %232 = vmatpush1.bf16.msra.mxu0 0
    %233 = vmatprep.subr.bf16.mxu0 0
    %234 = vmatpush1.bf16.msra.mxu0 0
    %235 = vmatprep.subr.bf16.mxu0 0
    %236 = vmatpush1.bf16.msra.mxu0 0
    %237 = vmatprep.subr.bf16.mxu0 0
    %238 = vmatpush1.bf16.msra.mxu0 0
    %239 = vmatprep.subr.bf16.mxu0 0
    %240 = vmatpush1.bf16.msra.mxu0 0
    %241 = vmatprep.subr.bf16.mxu0 0
    %242 = vmatpush1.bf16.msra.mxu0 0
    %243 = vmatprep.subr.bf16.mxu0 0
    %244 = vmatpush1.bf16.msra.mxu0 0
    %245 = vmatprep.mubr.bf16.mxu0 0
    %246 = vmatmul.mubr.bf16.gmra.mrb[0].mxu0 %v118
    %v247 = vpop.f32.mrb[0].mxu0
    %v248 = vadd.f32 %v163, %v247
    %v249 = vpop.f32.mrb[0].mxu0
    %v250 = vpop.f32.mrb[0].mxu0
    %v251 = vadd.f32 %v163, %v250
    %v252 = vpop.f32.mrb[0].mxu0
    %253 = vmatprep.mubr.bf16.mxu0 0
    %254 = vmatmul.mubr.bf16.gmra.mrb[0].mxu0 %v119
    %v255 = vpop.f32.mrb[0].mxu0
    %v256 = vadd.f32 %v163, %v255
    %v257 = vpop.f32.mrb[0].mxu0
    %v258 = vpop.f32.mrb[0].mxu0
    %v259 = vadd.f32 %v163, %v258
    %v260 = vpop.f32.mrb[0].mxu0
    %261 = vmatprep.mubr.bf16.mxu0 0
    %262 = vmatmul.mubr.bf16.gmra.mrb[0].mxu0 %v120
    %v263 = vpop.f32.mrb[0].mxu0
    %v264 = vadd.f32 %v163, %v263
    %v265 = vpop.f32.mrb[0].mxu0
    %v266 = vpop.f32.mrb[0].mxu0
    %v267 = vadd.f32 %v163, %v266
    %v268 = vpop.f32.mrb[0].mxu0
    %269 = vmatprep.mubr.bf16.mxu0 0
    %270 = vmatmul.mubr.bf16.gmra.mrb[0].mxu0 %v121
    %v271 = vpop.f32.mrb[0].mxu0
    %v272 = vadd.f32 %v163, %v271
    %v273 = vpop.f32.mrb[0].mxu0
    %v274 = vpop.f32.mrb[0].mxu0
    %v275 = vadd.f32 %v163, %v274
    %v276 = vpop.f32.mrb[0].mxu0
    %277 = vmatprep.mubr.bf16.mxu0 0
    %278 = vmatmul.mubr.bf16.gmra.mrb[0].mxu0 %v122
    %v279 = vpop.f32.mrb[0].mxu0
    %v280 = vadd.f32 %v163, %v279
    %v281 = vpop.f32.mrb[0].mxu0
    %v282 = vpop.f32.mrb[0].mxu0
    %v283 = vadd.f32 %v163, %v282
    %v284 = vpop.f32.mrb[0].mxu0
    %285 = vmatprep.mubr.bf16.mxu0 0
    %286 = vmatmul.mubr.bf16.gmra.mrb[0].mxu0 %v123
    %v287 = vpop.f32.mrb[0].mxu0
    %v288 = vadd.f32 %v163, %v287
    %v289 = vpop.f32.mrb[0].mxu0
    %v290 = vpop.f32.mrb[0].mxu0
    %v291 = vadd.f32 %v163, %v290
    %v292 = vpop.f32.mrb[0].mxu0
    %293 = vmatprep.mubr.bf16.mxu0 0
    %294 = vmatmul.mubr.bf16.gmra.mrb[0].mxu0 %v124
    %v295 = vpop.f32.mrb[0].mxu0
    %v296 = vadd.f32 %v163, %v295
    %v297 = vpop.f32.mrb[0].mxu0
    %v298 = vpop.f32.mrb[0].mxu0
    %v299 = vadd.f32 %v163, %v298
    %v300 = vpop.f32.mrb[0].mxu0
    %301 = vmatprep.mubr.bf16.mxu0 0
    %302 = vmatmul.mubr.bf16.gmra.mrb[0].mxu0 %v125
    %v303 = vpop.f32.mrb[0].mxu0
    %v304 = vadd.f32 %v163, %v303
    %v305 = vpop.f32.mrb[0].mxu0
    %v306 = vpop.f32.mrb[0].mxu0
    %v307 = vadd.f32 %v163, %v306
    %v308 = vpop.f32.mrb[0].mxu0
    %309 = vmatprep.mubr.bf16.mxu0 0
    %310 = vmatmul.mubr.bf16.gmra.mrb[0].mxu0 %v126
    %v311 = vpop.f32.mrb[0].mxu0
    %v312 = vadd.f32 %v163, %v311
    %v313 = vpop.f32.mrb[0].mxu0
    %v314 = vpop.f32.mrb[0].mxu0
    %v315 = vadd.f32 %v163, %v314
    %v316 = vpop.f32.mrb[0].mxu0
    %317 = vmatprep.mubr.bf16.mxu0 0
    %318 = vmatmul.mubr.bf16.gmra.mrb[0].mxu0 %v127
    %v319 = vpop.f32.mrb[0].mxu0
    %v320 = vadd.f32 %v163, %v319
    %v321 = vpop.f32.mrb[0].mxu0
    %v322 = vpop.f32.mrb[0].mxu0
    %v323 = vadd.f32 %v163, %v322
    %v324 = vpop.f32.mrb[0].mxu0
    %325 = vmatprep.mubr.bf16.mxu0 0
    %326 = vmatmul.mubr.bf16.gmra.mrb[0].mxu0 %v128
    %v327 = vpop.f32.mrb[0].mxu0
    %v328 = vadd.f32 %v163, %v327
    %v329 = vpop.f32.mrb[0].mxu0
    %v330 = vpop.f32.mrb[0].mxu0
    %v331 = vadd.f32 %v163, %v330
    %v332 = vpop.f32.mrb[0].mxu0
    %333 = vmatprep.mubr.bf16.mxu0 0
    %334 = vmatmul.mubr.bf16.gmra.mrb[0].mxu0 %v129
    %v335 = vpop.f32.mrb[0].mxu0
    %v336 = vadd.f32 %v163, %v335
    %v337 = vpop.f32.mrb[0].mxu0
    %v338 = vpop.f32.mrb[0].mxu0
    %v339 = vadd.f32 %v163, %v338
    %v340 = vpop.f32.mrb[0].mxu0
    %341 = vmatprep.mubr.bf16.mxu0 0
    %342 = vmatmul.mubr.bf16.gmra.mrb[0].mxu0 %v130
    %v343 = vpop.f32.mrb[0].mxu0
    %v344 = vadd.f32 %v163, %v343
    %v345 = vpop.f32.mrb[0].mxu0
    %v346 = vpop.f32.mrb[0].mxu0
    %v347 = vadd.f32 %v163, %v346
    %v348 = vpop.f32.mrb[0].mxu0
    %349 = vmatprep.mubr.bf16.mxu0 0
    %350 = vmatmul.mubr.bf16.gmra.mrb[0].mxu0 %v131
    %v351 = vpop.f32.mrb[0].mxu0
    %v352 = vadd.f32 %v163, %v351
    %v353 = vpop.f32.mrb[0].mxu0
    %v354 = vpop.f32.mrb[0].mxu0
    %v355 = vadd.f32 %v163, %v354
    %v356 = vpop.f32.mrb[0].mxu0
    %357 = vmatprep.mubr.bf16.mxu0 0
    %358 = vmatmul.mubr.bf16.gmra.mrb[0].mxu0 %v132
    %v359 = vpop.f32.mrb[0].mxu0
    %v360 = vadd.f32 %v163, %v359
    %v361 = vpop.f32.mrb[0].mxu0
    %v362 = vpop.f32.mrb[0].mxu0
    %v363 = vadd.f32 %v163, %v362
    %v364 = vpop.f32.mrb[0].mxu0
    %365 = vmatprep.mubr.bf16.mxu0 0
    %366 = vmatmul.mubr.bf16.gmra.mrb[0].mxu0 %v133
    %v367 = vpop.f32.mrb[0].mxu0
    %v368 = vadd.f32 %v163, %v367
    %v369 = vpop.f32.mrb[0].mxu0
    %v370 = vpop.f32.mrb[0].mxu0
    %v371 = vadd.f32 %v163, %v370
    %v372 = vpop.f32.mrb[0].mxu0
    %373 = vmatprep.mubr.bf16.mxu0 0
    %374 = vmatmul.mubr.bf16.gmra.mrb[0].mxu0 %v134
    %v375 = vpop.f32.mrb[0].mxu0
    %v376 = vadd.f32 %v163, %v375
    %v377 = vpop.f32.mrb[0].mxu0
    %v378 = vpop.f32.mrb[0].mxu0
    %v379 = vadd.f32 %v163, %v378
    %v380 = vpop.f32.mrb[0].mxu0
    %381 = vmatprep.mubr.bf16.mxu0 0
    %382 = vmatmul.mubr.bf16.gmra.mrb[0].mxu0 %v135
    %v383 = vpop.f32.mrb[0].mxu0
    %v384 = vadd.f32 %v163, %v383
    %v385 = vpop.f32.mrb[0].mxu0
    %v386 = vpop.f32.mrb[0].mxu0
    %v387 = vadd.f32 %v163, %v386
    %v388 = vpop.f32.mrb[0].mxu0
    %389 = vmatprep.mubr.bf16.mxu0 0
    %390 = vmatmul.mubr.bf16.gmra.mrb[0].mxu0 %v136
    %v391 = vpop.f32.mrb[0].mxu0
    %v392 = vadd.f32 %v163, %v391
    %v393 = vpop.f32.mrb[0].mxu0
    %v394 = vpop.f32.mrb[0].mxu0
    %v395 = vadd.f32 %v163, %v394
    %v396 = vpop.f32.mrb[0].mxu0
    %397 = vmatprep.mubr.bf16.mxu0 0
    %398 = vmatmul.mubr.bf16.gmra.mrb[0].mxu0 %v137
    %v399 = vpop.f32.mrb[0].mxu0
    %v400 = vadd.f32 %v163, %v399
    %v401 = vpop.f32.mrb[0].mxu0
    %v402 = vpop.f32.mrb[0].mxu0
    %v403 = vadd.f32 %v163, %v402
    %v404 = vpop.f32.mrb[0].mxu0
    %405 = vmatprep.mubr.bf16.mxu0 0
    %406 = vmatmul.mubr.bf16.gmra.mrb[0].mxu0 %v138
    %v407 = vpop.f32.mrb[0].mxu0
    %v408 = vadd.f32 %v163, %v407
    %v409 = vpop.f32.mrb[0].mxu0
    %v410 = vpop.f32.mrb[0].mxu0
    %v411 = vadd.f32 %v163, %v410
    %v412 = vpop.f32.mrb[0].mxu0
    %413 = vmatprep.mubr.bf16.mxu0 0
    %414 = vmatmul.mubr.bf16.gmra.mrb[0].mxu0 %v139
    %v415 = vpop.f32.mrb[0].mxu0
    %v416 = vadd.f32 %v163, %v415
    %v417 = vpop.f32.mrb[0].mxu0
    %v418 = vpop.f32.mrb[0].mxu0
    %v419 = vadd.f32 %v163, %v418
    %v420 = vpop.f32.mrb[0].mxu0
    %421 = vmatprep.mubr.bf16.mxu0 0
    %422 = vmatmul.mubr.bf16.gmra.mrb[0].mxu0 %v140
    %v423 = vpop.f32.mrb[0].mxu0
    %v424 = vadd.f32 %v163, %v423
    %v425 = vpop.f32.mrb[0].mxu0
    %v426 = vpop.f32.mrb[0].mxu0
    %v427 = vadd.f32 %v163, %v426
    %v428 = vpop.f32.mrb[0].mxu0
    %429 = vmatprep.mubr.bf16.mxu0 0
    %430 = vmatmul.mubr.bf16.gmra.mrb[0].mxu0 %v141
    %v431 = vpop.f32.mrb[0].mxu0
    %v432 = vadd.f32 %v163, %v431
    %v433 = vpop.f32.mrb[0].mxu0
    %v434 = vpop.f32.mrb[0].mxu0
    %v435 = vadd.f32 %v163, %v434
    %v436 = vpop.f32.mrb[0].mxu0
    %437 = vdwg.mxu0
    %v438 = vtanh.pop %v248
    %v439 = vtanh.pop %v251
    %v440 = vtanh.pop %v256
    %v441 = vtanh.pop %v259
    %v442 = vtanh.pop %v264
    %v443 = vtanh.pop %v267
    %v444 = vtanh.pop %v272
    %v445 = vtanh.pop %v275
    %v446 = vtanh.pop %v280
    %v447 = vtanh.pop %v283
    %v448 = vtanh.pop %v288
    %v449 = vtanh.pop %v291
    %v450 = vtanh.pop %v296
    %v451 = vtanh.pop %v299
    %v452 = vtanh.pop %v304
    %v453 = vtanh.pop %v307
    %v454 = vtanh.pop %v312
    %v455 = vtanh.pop %v315
    %v456 = vtanh.pop %v320
    %v457 = vtanh.pop %v323
    %v458 = vtanh.pop %v328
    %v459 = vtanh.pop %v331
    %v460 = vtanh.pop %v336
    %v461 = vtanh.pop %v339
    %v462 = vtanh.pop %v344
    %v463 = vtanh.pop %v347
    %v464 = vtanh.pop %v352
    %v465 = vtanh.pop %v355
    %v466 = vtanh.pop %v360
    %v467 = vtanh.pop %v363
    %v468 = vtanh.pop %v368
    %v469 = vtanh.pop %v371
    %v470 = vtanh.pop %v376
    %v471 = vtanh.pop %v379
    %v472 = vtanh.pop %v384
    %v473 = vtanh.pop %v387
    %v474 = vtanh.pop %v392
    %v475 = vtanh.pop %v395
    %v476 = vtanh.pop %v400
    %v477 = vtanh.pop %v403
    %v478 = vtanh.pop %v408
    %v479 = vtanh.pop %v411
    %v480 = vtanh.pop %v416
    %v481 = vtanh.pop %v419
    %v482 = vtanh.pop %v424
    %v483 = vtanh.pop %v427
    %v484 = vtanh.pop %v432
    %v485 = vtanh.pop %v435
    %v486 = vld [vmem:[#allocation8] sm:$0x1]
    %v488 = vlaneseq
    %v489 = vshrl.u32 %v488, 7
    %v490 = vsub.s32 0, %v489
    %v491 = vrot.slane %v486, %v490
    %v493 = vmul.f32 %v438, %v491
    %v494 = vmul.f32 %v439, %v491
    %v495 = vmul.f32 %v440, %v491
    %v496 = vmul.f32 %v441, %v491
    %v497 = vmul.f32 %v442, %v491
    %v498 = vmul.f32 %v443, %v491
    %v499 = vmul.f32 %v444, %v491
    %v500 = vmul.f32 %v445, %v491
    %v501 = vmul.f32 %v446, %v491
    %v502 = vmul.f32 %v447, %v491
    %v503 = vmul.f32 %v448, %v491
    %v504 = vmul.f32 %v449, %v491
    %v505 = vmul.f32 %v450, %v491
    %v506 = vmul.f32 %v451, %v491
    %v507 = vmul.f32 %v452, %v491
    %v508 = vmul.f32 %v453, %v491
    %v509 = vmul.f32 %v454, %v491
    %v510 = vmul.f32 %v455, %v491
    %v511 = vmul.f32 %v456, %v491
    %v512 = vmul.f32 %v457, %v491
    %v513 = vmul.f32 %v458, %v491
    %v514 = vmul.f32 %v459, %v491
    %v515 = vmul.f32 %v460, %v491
    %v516 = vmul.f32 %v461, %v491
    %v517 = vmul.f32 %v462, %v491
    %v518 = vmul.f32 %v463, %v491
    %v519 = vmul.f32 %v464, %v491
    %v520 = vmul.f32 %v465, %v491
    %v521 = vmul.f32 %v466, %v491
    %v522 = vmul.f32 %v467, %v491
    %v523 = vmul.f32 %v468, %v491
    %v524 = vmul.f32 %v469, %v491
    %v525 = vmul.f32 %v470, %v491
    %v526 = vmul.f32 %v471, %v491
    %v527 = vmul.f32 %v472, %v491
    %v528 = vmul.f32 %v473, %v491
    %v529 = vmul.f32 %v474, %v491
    %v530 = vmul.f32 %v475, %v491
    %v531 = vmul.f32 %v476, %v491
    %v532 = vmul.f32 %v477, %v491
    %v533 = vmul.f32 %v478, %v491
    %v534 = vmul.f32 %v479, %v491
    %v535 = vmul.f32 %v480, %v491
    %v536 = vmul.f32 %v481, %v491
    %v537 = vmul.f32 %v482, %v491
    %v538 = vmul.f32 %v483, %v491
    %v539 = vmul.f32 %v484, %v491
    %v540 = vmul.f32 %v485, %v491
    %541 = vadd.xlane.f32.xlu0 %v493
    %v542 = vpop.xlane.xlu0 %541
    %543 = vadd.xlane.f32.xlu0 %v494
    %v544 = vpop.xlane.xlu0 %543
    %545 = vadd.xlane.f32.xlu0 %v495
    %v546 = vpop.xlane.xlu0 %545
    %547 = vadd.xlane.f32.xlu0 %v496
    %v548 = vpop.xlane.xlu0 %547
    %549 = vadd.xlane.f32.xlu0 %v497
    %v550 = vpop.xlane.xlu0 %549
    %551 = vadd.xlane.f32.xlu0 %v498
    %v552 = vpop.xlane.xlu0 %551
    %553 = vadd.xlane.f32.xlu0 %v499
    %v554 = vpop.xlane.xlu0 %553
    %555 = vadd.xlane.f32.xlu0 %v500
    %v556 = vpop.xlane.xlu0 %555
    %557 = vadd.xlane.f32.xlu0 %v501
    %v558 = vpop.xlane.xlu0 %557
    %559 = vadd.xlane.f32.xlu0 %v502
    %v560 = vpop.xlane.xlu0 %559
    %561 = vadd.xlane.f32.xlu0 %v503
    %v562 = vpop.xlane.xlu0 %561
    %563 = vadd.xlane.f32.xlu0 %v504
    %v564 = vpop.xlane.xlu0 %563
    %565 = vadd.xlane.f32.xlu0 %v505
    %v566 = vpop.xlane.xlu0 %565
    %567 = vadd.xlane.f32.xlu0 %v506
    %v568 = vpop.xlane.xlu0 %567
    %569 = vadd.xlane.f32.xlu0 %v507
    %v570 = vpop.xlane.xlu0 %569
    %571 = vadd.xlane.f32.xlu0 %v508
    %v572 = vpop.xlane.xlu0 %571
    %v573 = vadd.f32 %v542, %v544
    %v574 = vadd.f32 %v573, %v546
    %v575 = vadd.f32 %v574, %v548
    %v576 = vadd.f32 %v575, %v550
    %v577 = vadd.f32 %v576, %v552
    %v578 = vadd.f32 %v577, %v554
    %v579 = vadd.f32 %v578, %v556
    %v580 = vadd.f32 %v579, %v558
    %v581 = vadd.f32 %v580, %v560
    %v582 = vadd.f32 %v581, %v562
    %v583 = vadd.f32 %v582, %v564
    %v584 = vadd.f32 %v583, %v566
    %v585 = vadd.f32 %v584, %v568
    %v586 = vadd.f32 %v585, %v570
    %v587 = vadd.f32 %v586, %v572
    %v588 = vrot.slane %v587, 4
    %v589 = vadd.f32 %v587, %v588
    %v590 = vrot.slane %v589, 2
    %v591 = vadd.f32 %v589, %v590
    %v592 = vrot.slane %v591, 1
    %v593 = vadd.f32 %v591, %v592
    %v594 = vmul.f32 %v593, 0.0078125
    %595 = vadd.xlane.f32.xlu0 %v509
    %v596 = vpop.xlane.xlu0 %595
    %597 = vadd.xlane.f32.xlu0 %v510
    %v598 = vpop.xlane.xlu0 %597
    %599 = vadd.xlane.f32.xlu0 %v511
    %v600 = vpop.xlane.xlu0 %599
    %601 = vadd.xlane.f32.xlu0 %v512
    %v602 = vpop.xlane.xlu0 %601
    %603 = vadd.xlane.f32.xlu0 %v513
    %v604 = vpop.xlane.xlu0 %603
    %605 = vadd.xlane.f32.xlu0 %v514
    %v606 = vpop.xlane.xlu0 %605
    %607 = vadd.xlane.f32.xlu0 %v515
    %v608 = vpop.xlane.xlu0 %607
    %609 = vadd.xlane.f32.xlu0 %v516
    %v610 = vpop.xlane.xlu0 %609
    %611 = vadd.xlane.f32.xlu0 %v517
    %v612 = vpop.xlane.xlu0 %611
    %613 = vadd.xlane.f32.xlu0 %v518
    %v614 = vpop.xlane.xlu0 %613
    %615 = vadd.xlane.f32.xlu0 %v519
    %v616 = vpop.xlane.xlu0 %615
    %617 = vadd.xlane.f32.xlu0 %v520
    %v618 = vpop.xlane.xlu0 %617
    %619 = vadd.xlane.f32.xlu0 %v521
    %v620 = vpop.xlane.xlu0 %619
    %621 = vadd.xlane.f32.xlu0 %v522
    %v622 = vpop.xlane.xlu0 %621
    %623 = vadd.xlane.f32.xlu0 %v523
    %v624 = vpop.xlane.xlu0 %623
    %625 = vadd.xlane.f32.xlu0 %v524
    %v626 = vpop.xlane.xlu0 %625
    %v627 = vadd.f32 %v596, %v598
    %v628 = vadd.f32 %v627, %v600
    %v629 = vadd.f32 %v628, %v602
    %v630 = vadd.f32 %v629, %v604
    %v631 = vadd.f32 %v630, %v606
    %v632 = vadd.f32 %v631, %v608
    %v633 = vadd.f32 %v632, %v610
    %v634 = vadd.f32 %v633, %v612
    %v635 = vadd.f32 %v634, %v614
    %v636 = vadd.f32 %v635, %v616
    %v637 = vadd.f32 %v636, %v618
    %v638 = vadd.f32 %v637, %v620
    %v639 = vadd.f32 %v638, %v622
    %v640 = vadd.f32 %v639, %v624
    %v641 = vadd.f32 %v640, %v626
    %v642 = vrot.slane %v641, 4
    %v643 = vadd.f32 %v641, %v642
    %v644 = vrot.slane %v643, 2
    %v645 = vadd.f32 %v643, %v644
    %v646 = vrot.slane %v645, 1
    %v647 = vadd.f32 %v645, %v646
    %v648 = vmul.f32 %v647, 0.0078125
    %649 = vadd.xlane.f32.xlu0 %v525
    %v650 = vpop.xlane.xlu0 %649
    %651 = vadd.xlane.f32.xlu0 %v526
    %v652 = vpop.xlane.xlu0 %651
    %653 = vadd.xlane.f32.xlu0 %v527
    %v654 = vpop.xlane.xlu0 %653
    %655 = vadd.xlane.f32.xlu0 %v528
    %v656 = vpop.xlane.xlu0 %655
    %657 = vadd.xlane.f32.xlu0 %v529
    %v658 = vpop.xlane.xlu0 %657
    %659 = vadd.xlane.f32.xlu0 %v530
    %v660 = vpop.xlane.xlu0 %659
    %661 = vadd.xlane.f32.xlu0 %v531
    %v662 = vpop.xlane.xlu0 %661
    %663 = vadd.xlane.f32.xlu0 %v532
    %v664 = vpop.xlane.xlu0 %663
    %665 = vadd.xlane.f32.xlu0 %v533
    %v666 = vpop.xlane.xlu0 %665
    %667 = vadd.xlane.f32.xlu0 %v534
    %v668 = vpop.xlane.xlu0 %667
    %669 = vadd.xlane.f32.xlu0 %v535
    %v670 = vpop.xlane.xlu0 %669
    %671 = vadd.xlane.f32.xlu0 %v536
    %v672 = vpop.xlane.xlu0 %671
    %673 = vadd.xlane.f32.xlu0 %v537
    %v674 = vpop.xlane.xlu0 %673
    %675 = vadd.xlane.f32.xlu0 %v538
    %v676 = vpop.xlane.xlu0 %675
    %677 = vadd.xlane.f32.xlu0 %v539
    %v678 = vpop.xlane.xlu0 %677
    %679 = vadd.xlane.f32.xlu0 %v540
    %v680 = vpop.xlane.xlu0 %679
    %v681 = vadd.f32 %v650, %v652
    %v682 = vadd.f32 %v681, %v654
    %v683 = vadd.f32 %v682, %v656
    %v684 = vadd.f32 %v683, %v658
    %v685 = vadd.f32 %v684, %v660
    %v686 = vadd.f32 %v685, %v662
    %v687 = vadd.f32 %v686, %v664
    %v688 = vadd.f32 %v687, %v666
    %v689 = vadd.f32 %v688, %v668
    %v690 = vadd.f32 %v689, %v670
    %v691 = vadd.f32 %v690, %v672
    %v692 = vadd.f32 %v691, %v674
    %v693 = vadd.f32 %v692, %v676
    %v694 = vadd.f32 %v693, %v678
    %v695 = vadd.f32 %v694, %v680
    %v696 = vrot.slane %v695, 4
    %v697 = vadd.f32 %v695, %v696
    %v698 = vrot.slane %v697, 2
    %v699 = vadd.f32 %v697, %v698
    %v700 = vrot.slane %v699, 1
    %v701 = vadd.f32 %v699, %v700
    %v702 = vmul.f32 %v701, 0.0078125
    %v703 = vmax.f32 %v594, %v648
    %v704 = vmax.f32 %v703, %v702
    %v705 = vsub.f32 %v594, %v704
    %v706 = vmul.f32 %v705, 1.442695
    %v707 = vpow.pop %v706
    %v708 = vsub.f32 %v648, %v704
    %v709 = vmul.f32 %v708, 1.442695
    %v710 = vpow.pop %v709
    %v711 = vsub.f32 %v702, %v704
    %v712 = vmul.f32 %v711, 1.442695
    %v713 = vpow.pop %v712
    %v714 = vadd.f32 %v707, %v710
    %v715 = vadd.f32 %v714, %v713
    %v716 = vrcp.pop %v715
    %v717 = vmul.f32 %v707, %v716
    %v718 = vmul.f32 %v717, %v70
    %v719 = vmul.f32 %v717, %v71
    %v720 = vmul.f32 %v717, %v72
    %v721 = vmul.f32 %v717, %v73
    %v722 = vmul.f32 %v717, %v74
    %v723 = vmul.f32 %v717, %v75
    %v724 = vmul.f32 %v717, %v76
    %v725 = vmul.f32 %v717, %v77
    %v726 = vmul.f32 %v717, %v78
    %v727 = vmul.f32 %v717, %v79
    %v728 = vmul.f32 %v717, %v80
    %v729 = vmul.f32 %v717, %v81
    %v730 = vmul.f32 %v717, %v82
    %v731 = vmul.f32 %v717, %v83
    %v732 = vmul.f32 %v717, %v84
    %v733 = vmul.f32 %v717, %v85
    %v734 = vmul.f32 %v710, %v716
    %v735 = vmul.f32 %v734, %v86
    %v736 = vmul.f32 %v734, %v87
    %v737 = vmul.f32 %v734, %v88
    %v738 = vmul.f32 %v734, %v89
    %v739 = vmul.f32 %v734, %v90
    %v740 = vmul.f32 %v734, %v91
    %v741 = vmul.f32 %v734, %v92
    %v742 = vmul.f32 %v734, %v93
    %v743 = vmul.f32 %v734, %v94
    %v744 = vmul.f32 %v734, %v95
    %v745 = vmul.f32 %v734, %v96
    %v746 = vmul.f32 %v734, %v97
    %v747 = vmul.f32 %v734, %v98
    %v748 = vmul.f32 %v734, %v99
    %v749 = vmul.f32 %v734, %v100
    %v750 = vmul.f32 %v734, %v101
    %v751 = vadd.f32 %v718, %v735
    %v752 = vadd.f32 %v719, %v736
    %v753 = vadd.f32 %v720, %v737
    %v754 = vadd.f32 %v721, %v738
    %v755 = vadd.f32 %v722, %v739
    %v756 = vadd.f32 %v723, %v740
    %v757 = vadd.f32 %v724, %v741
    %v758 = vadd.f32 %v725, %v742
    %v759 = vadd.f32 %v726, %v743
    %v760 = vadd.f32 %v727, %v744
    %v761 = vadd.f32 %v728, %v745
    %v762 = vadd.f32 %v729, %v746
    %v763 = vadd.f32 %v730, %v747
    %v764 = vadd.f32 %v731, %v748
    %v765 = vadd.f32 %v732, %v749
    %v766 = vadd.f32 %v733, %v750
    %v767 = vmul.f32 %v713, %v716
    %v768 = vmul.f32 %v767, %v102
    %v769 = vmul.f32 %v767, %v103
    %v770 = vmul.f32 %v767, %v104
    %v771 = vmul.f32 %v767, %v105
    %v772 = vmul.f32 %v767, %v106
    %v773 = vmul.f32 %v767, %v107
    %v774 = vmul.f32 %v767, %v108
    %v775 = vmul.f32 %v767, %v109
    %v776 = vmul.f32 %v767, %v110
    %v777 = vmul.f32 %v767, %v111
    %v778 = vmul.f32 %v767, %v112
    %v779 = vmul.f32 %v767, %v113
    %v780 = vmul.f32 %v767, %v114
    %v781 = vmul.f32 %v767, %v115
    %v782 = vmul.f32 %v767, %v116
    %v783 = vmul.f32 %v767, %v117
    %v784 = vadd.f32 %v751, %v768
    %v785 = vadd.f32 %v752, %v769
    %v786 = vadd.f32 %v753, %v770
    %v787 = vadd.f32 %v754, %v771
    %v788 = vadd.f32 %v755, %v772
    %v789 = vadd.f32 %v756, %v773
    %v790 = vadd.f32 %v757, %v774
    %v791 = vadd.f32 %v758, %v775
    %v792 = vadd.f32 %v759, %v776
    %v793 = vadd.f32 %v760, %v777
    %v794 = vadd.f32 %v761, %v778
    %v795 = vadd.f32 %v762, %v779
    %v796 = vadd.f32 %v763, %v780
    %v797 = vadd.f32 %v764, %v781
    %v798 = vadd.f32 %v765, %v782
    %v799 = vadd.f32 %v766, %v783
    %800 = vst [vmem:[#allocation10] sm:$0xff] %v784
    %801 = vst [vmem:[#allocation10 + $0x8] sm:$0xff] %v785
    %802 = vst [vmem:[#allocation10 + $0x10] sm:$0xff] %v786
    %803 = vst [vmem:[#allocation10 + $0x18] sm:$0xff] %v787
    %804 = vst [vmem:[#allocation10 + $0x20] sm:$0xff] %v788
    %805 = vst [vmem:[#allocation10 + $0x28] sm:$0xff] %v789
    %806 = vst [vmem:[#allocation10 + $0x30] sm:$0xff] %v790
    %807 = vst [vmem:[#allocation10 + $0x38] sm:$0xff] %v791
    %808 = vst [vmem:[#allocation10 + $0x40] sm:$0xff] %v792
    %809 = vst [vmem:[#allocation10 + $0x48] sm:$0xff] %v793
    %810 = vst [vmem:[#allocation10 + $0x50] sm:$0xff] %v794
    %811 = vst [vmem:[#allocation10 + $0x58] sm:$0xff] %v795
    %812 = vst [vmem:[#allocation10 + $0x60] sm:$0xff] %v796
    %813 = vst [vmem:[#allocation10 + $0x68] sm:$0xff] %v797
    %814 = vst [vmem:[#allocation10 + $0x70] sm:$0xff] %v798
    %815 = vst [vmem:[#allocation10 + $0x78] sm:$0xff] %v799
    // Predicated region
    $region34: #{attention_forward.1} parent=1 // pred_check
      _
    $region35: #{attention_forward.1} parent=1 // pred_check_branch
      %817 = sbr.rel (0) target = $region37
    $region36: #{attention_forward.1} parent=1 // pred_region
      %s819 = ssub.s32 2048, 2048
      %820 = vsyncadd [#allocation4], %s819
      %s821 = sshll.u32 [#allocation10], 4
      %s822 = int_to_ptr.vmem [resolvable:$true] %s821
      %827 = dma.vmem_to_hbm [thread:$0]  %s822, 2048, %s4, [#allocation4], 128, 128, 8
    $region37: #{attention_forward.1} parent=1 // pred_fallthru
      _
    // Predicated region
    $region38: #{attention_forward.1} parent=1 // pred_check
      _
    $region39: #{attention_forward.1} parent=1 // pred_check_branch
      %829 = sbr.rel (0) target = $region41
    $region40: #{attention_forward.1} parent=1 // pred_region
      %830 = dma.done [#allocation4], 2048
    $region41: #{attention_forward.1} parent=1 // pred_fallthru
      _
    %831 = vsyncpa [#allocation3], 1
    %832 = vsyncpa [#allocation6], 1
    %833 = vsyncpa [#allocation9], 1
    %834 = vsyncpa [#allocation4], 1

</llo_original>
